<compile_context>
chip_gen: v7x
topology: tpu7x:2x2x1
jax: 0.10.0
libtpu: 0.0.40
codegen_flags: <defaults>
</compile_context>

<pallas_src>
import jax
import jax.numpy as jnp
from jax.experimental import pallas as pl
from jax.experimental.pallas import tpu as pltpu

N_MODELS = 10


def _folded_matvec_kernel(x_ref, w_ref, b_ref, o_ref):
    # x_ref: (TB, D) VMEM batch tile, w_ref: (1, D) VMEM folded weight row,
    # b_ref: (1, 1) SMEM folded bias, o_ref: (TB, 1) VMEM output tile.
    # VPU elementwise multiply (w broadcast over sublanes) + XLU lane reduce:
    # cheap enough to hide completely under the x DMA.
    y = jnp.sum(x_ref[...] * w_ref[...], axis=1, keepdims=True)
    o_ref[...] = (y + b_ref[0, 0]).astype(o_ref.dtype)
    # TODO(synk): optionally emit a lane-dense (1, TB) output block (v5e vst
    # lever); output volume is tiny so it is left as the simpler (TB, 1) store.


def _choose_batch_tile(B, D, *, target_tile_bytes=4 * 1024 * 1024):
    """Pick a batch tile (rows, multiple of 8) targeting ~target_tile_bytes of
    f32 x data per tile.  Double-buffered this stays well under the smallest
    default scoped-VMEM limits (v5e 16 MiB, v7x 32 MiB)."""
    bytes_per_row = D * 4
    tb = max(8, (target_tile_bytes // bytes_per_row) // 8 * 8)
    # Guarantee >= 2 grid tiles when the batch is big enough, so v7x's second
    # TensorCore has work on the "parallel" axis (no-op on 1-TC v5e/v6e).
    if B >= 16:
        half = max(8, (pl.cdiv(B, 2) // 8) * 8)
        tb = min(tb, half)
    return tb


def mock_model2_forward(x, W, b, *, target_tile_bytes=4 * 1024 * 1024):
    """Ensemble-mean forward of MockModel2.

    x: (B, A, L) float32; W: (10, A*L); b: (10,). Returns (B, 1) float32.
    """
    B = x.shape[0]
    D = W.shape[1]
    x_flat = x.reshape(B, D)

    # Fold the 10-model ensemble into one weight row + scalar bias.
    w_eff = jnp.mean(W, axis=0).reshape(1, D).astype(jnp.float32)  # lane-major row
    b_eff = jnp.mean(b).reshape(1, 1).astype(jnp.float32)          # scalar bias (SMEM)

    tb = _choose_batch_tile(B, D, target_tile_bytes=target_tile_bytes)
    if tb >= B:
        # Single tile covering the full batch (block == full dim satisfies the
        # (8,128) divisibility rule even when B is not a multiple of 8).
        tb = B
    n_tiles = pl.cdiv(B, tb)  # ragged last block allowed: rows are independent

    cost = pl.CostEstimate(
        flops=2 * B * D,
        transcendentals=0,
        bytes_accessed=4 * B * D + 4 * D + 4 * B,
    )

    # TODO(synk): for extremely large D (a single (TB, D) row-tile too big for
    # VMEM) add a reduction-tiled grid over D with a (TB, 1) accumulator.
    out = pl.pallas_call(
        _folded_matvec_kernel,
        out_shape=jax.ShapeDtypeStruct((B, 1), jnp.float32),
        grid=(n_tiles,),
        in_specs=[
            pl.BlockSpec((tb, D), lambda i: (i, 0)),            # streamed x tiles
            pl.BlockSpec((1, D), lambda i: (0, 0)),             # resident folded weight
            pl.BlockSpec(memory_space=pltpu.MemorySpace.SMEM),  # scalar bias
        ],
        out_specs=pl.BlockSpec((tb, 1), lambda i: (i, 0)),
        compiler_params=pltpu.CompilerParams(
            dimension_semantics=("parallel",),  # shard batch tiles across TCs on v7x
        ),
        cost_estimate=cost,
    )(x_flat, w_eff, b_eff)

    return out


def init_params(A, L, key):
    """Mimics torch.nn.Linear init: U(-1/sqrt(fan_in), +1/sqrt(fan_in))."""
    D = A * L
    kw, kb = jax.random.split(key)
    bound = 1.0 / jnp.sqrt(D)
    W = jax.random.uniform(kw, (N_MODELS, D), jnp.float32, -bound, bound)
    b = jax.random.uniform(kb, (N_MODELS,), jnp.float32, -bound, bound)
    return W, b


def reference_forward(x, W, b):
    """Pure-JAX reference mirroring the PyTorch forward exactly (per-model then mean)."""
    B = x.shape[0]
    x_flat = x.reshape(B, -1)
    outs = jnp.einsum("md,bd->mb", W, x_flat)[..., None] + b[:, None, None]  # (10, B, 1)
    return outs.mean(axis=0)


if __name__ == "__main__":
    key = jax.random.PRNGKey(0)

    # Case 1: tiny shapes matching the unit test (single full-batch tile).
    A, L, B = 4, 8, 2
    kx, kp = jax.random.split(key)
    x = jax.random.normal(kx, (B, A, L), jnp.float32)
    W, b = init_params(A, L, kp)
    out = jax.block_until_ready(mock_model2_forward(x, W, b))
    ref = reference_forward(x, W, b)
    assert out.shape == (B, 1), out.shape
    assert jnp.allclose(out, ref, atol=1e-5, rtol=1e-5), (out, ref)

    # Case 2: batch bigger than the tile -> exercises the multi-tile path with a
    # ragged last block (B=44, tb=16 -> 3 tiles, last one partially filled).
    B2 = 44
    kx2, _ = jax.random.split(kx)
    x2 = jax.random.normal(kx2, (B2, A, L), jnp.float32)
    out2 = jax.block_until_ready(mock_model2_forward(x2, W, b, target_tile_bytes=2048))
    ref2 = reference_forward(x2, W, b)
    assert out2.shape == (B2, 1), out2.shape
    assert jnp.allclose(out2, ref2, atol=1e-5, rtol=1e-5), (out2, ref2)

    # TODO(synk): `uncertainty` (ensemble std) is not part of forward(); it would need the
    # unfolded 10-column matmul and can be added as a second pallas_call output if required.
    print("KERNEL_OK")
</pallas_src>

<mosaic_0001>
module attributes {stable_mosaic.version = 11 : i64} {
  func.func @_folded_matvec_kernel(%arg0: i32, %arg1: memref<2x32xf32, #tpu.memory_space<vmem>>, %arg2: memref<1x32xf32, #tpu.memory_space<vmem>>, %arg3: memref<1x1xf32, #tpu.memory_space<smem>>, %arg4: memref<2x1xf32, #tpu.memory_space<vmem>>) attributes {dimension_semantics = [#tpu.dimension_semantics<parallel>], iteration_bounds = array<i64: 1>, scalar_prefetch = 0 : i64, scratch_operands = 0 : i64, tpu.core_type = #tpu.core_type<tc>, window_params = [{transform_indices = @transform_0, window_bounds = array<i64: 2, 32>}, {pipeline_mode = #tpu.pipeline_mode<synchronous>, transform_indices = @transform_1, window_bounds = array<i64: 1, 32>}, {transform_indices = @transform_2, window_bounds = array<i64: 1, 1>}, {transform_indices = @transform_3, window_bounds = array<i64: 2, 1>}]} {
    %c0 = arith.constant 0 : index
    %c0_0 = arith.constant 0 : index
    %0 = vector.load %arg1[%c0, %c0_0] : memref<2x32xf32, #tpu.memory_space<vmem>>, vector<2x32xf32>
    %c0_1 = arith.constant 0 : index
    %c0_2 = arith.constant 0 : index
    %1 = vector.load %arg2[%c0_1, %c0_2] : memref<1x32xf32, #tpu.memory_space<vmem>>, vector<1x32xf32>
    %2 = vector.broadcast %1 : vector<1x32xf32> to vector<2x32xf32>
    %3 = arith.mulf %0, %2 : vector<2x32xf32>
    %cst = arith.constant dense<0.000000e+00> : vector<2xf32>
    %4 = vector.multi_reduction <add>, %3, %cst [1] : vector<2x32xf32> to vector<2xf32>
    %5 = vector.shape_cast %4 : vector<2xf32> to vector<2x1xf32>
    %c0_3 = arith.constant 0 : index
    %c0_4 = arith.constant 0 : index
    %6 = memref.load %arg3[%c0_3, %c0_4] : memref<1x1xf32, #tpu.memory_space<smem>>
    %7 = vector.broadcast %6 : f32 to vector<2x1xf32>
    %8 = arith.addf %5, %7 : vector<2x1xf32>
    %c0_5 = arith.constant 0 : index
    %c0_6 = arith.constant 0 : index
    %9 = vector.load %arg4[%c0_5, %c0_6] : memref<2x1xf32, #tpu.memory_space<vmem>>, vector<2x1xf32>
    tpu.vector_store %arg4[%c0_5, %c0_6], %8 {strides = array<i32>} : memref<2x1xf32, #tpu.memory_space<vmem>>, vector<2x1xf32>,
    return
  }
  func.func @transform_0(%arg0: i32) -> (i32, i32) {
    %c0_i32 = arith.constant 0 : i32
    %c0_i32_0 = arith.constant 0 : i32
    return %arg0, %c0_i32 : i32, i32
  }
  func.func @transform_1(%arg0: i32) -> (i32, i32) {
    %c0_i32 = arith.constant 0 : i32
    %c0_i32_0 = arith.constant 0 : i32
    %c0_i32_1 = arith.constant 0 : i32
    return %c0_i32, %c0_i32_0 : i32, i32
  }
  func.func @transform_2(%arg0: i32) -> (i32, i32) {
    %c0_i32 = arith.constant 0 : i32
    %c0_i32_0 = arith.constant 0 : i32
    %c0_i32_1 = arith.constant 0 : i32
    return %c0_i32, %c0_i32_0 : i32, i32
  }
  func.func @transform_3(%arg0: i32) -> (i32, i32) {
    %c0_i32 = arith.constant 0 : i32
    %c0_i32_0 = arith.constant 0 : i32
    return %arg0, %c0_i32 : i32, i32
  }
}

</mosaic_0001>

<llo_original>
// kernel: tpu_custom_call.1
$region0: #{tpu_custom_call.1}
  #allocation0 [shape = 'u32[]', space=smem, size = 0x4, offset = 0x4, fixed_abs, tag = 'smem constant byte address 0x4 - core index']
  #allocation1 [shape = 'u32[144,128]{1,0:T(1,128)}', space=vmem, size = 0x12000, scoped, tag = 'internal scratch']
  #allocation2 [shape = 'f32[1,1]{1,0:T(1,128)S(6)}', space=smem, size = 0x200, scoped, tag = 'scoped memory for tpu_custom_call.1']
  %s0 = inlined_call_operand.vmem [shape: f32[2,32], index: 0, kind: input, shape index: {}]
  %s1 = inlined_call_operand.vmem [shape: f32[1,32], index: 1, kind: input, shape index: {}]
  %s2 = inlined_call_operand.<no memory space> [shape: f32[1,1], index: 2, kind: input, shape index: {}]
  %s3 = inlined_call_operand.vmem [shape: f32[2,1], index: 3, kind: output, shape index: {}]
  %s4 = sld [smem:[#allocation0]]
  $region22: #{tpu_custom_call.1} parent=0
    _
  %s6 = ssub.s32 1, %s4
  %s7 = scalar_select 0, %s6, %s4
  %8 = sst [smem:[#allocation2]] %s2
  // Predicated region
  $region2: #{tpu_custom_call.1} parent=0 // pred_check
    _
  $region3: #{tpu_custom_call.1} parent=0 // pred_check_branch
    %10 = sbr.rel (0) target = $region5
  $region4: #{tpu_custom_call.1} parent=0 // pred_region
    _
  $region5: #{tpu_custom_call.1} parent=0 // pred_fallthru
    _
  // Predicated region
  $region6: #{tpu_custom_call.1} parent=0 // pred_check
    _
  $region7: #{tpu_custom_call.1} parent=0 // pred_check_branch
    %12 = sbr.rel (0) target = $region9
  $region8: #{tpu_custom_call.1} parent=0 // pred_region
    _
  $region9: #{tpu_custom_call.1} parent=0 // pred_fallthru
    _
  // Predicated region
  $region10: #{tpu_custom_call.1} parent=0 // pred_check
    _
  $region11: #{tpu_custom_call.1} parent=0 // pred_check_branch
    %14 = sbr.rel (0) target = $region13
  $region12: #{tpu_custom_call.1} parent=0 // pred_region
    _
  $region13: #{tpu_custom_call.1} parent=0 // pred_fallthru
    _
  %v15 = vld [vmem:[%s0] sm:$0x3]
  %v16 = vld [vmem:[%s1] sm:$0x1]
  %v18 = vlaneseq
  %v19 = vshrl.u32 %v18, 7
  %v20 = vsub.s32 0, %v19
  %v21 = vrot.slane %v16, %v20
  %v23 = vmul.f32 %v15, %v21
  %vm24 = vcmask 254976
  %v25 = vsel %vm24, %v23, 0.0
  %26 = vadd.xlane.f32.xlu0 %v25
  %v27 = vpop.xlane.xlu0 %26
  %s28 = sld [smem:[#allocation2]]
  %v29 = vstv %s28
  %v30 = vadd.f32 %v27, %v29
  %vm31 = vcmask 1024
  %32 = vst.msk [vmem:[%s3] sm:$0x3] %vm31, %v30
  // Predicated region
  $region14: #{tpu_custom_call.1} parent=0 // pred_check
    _
  $region15: #{tpu_custom_call.1} parent=0 // pred_check_branch
    %34 = sbr.rel (0) target = $region17
  $region16: #{tpu_custom_call.1} parent=0 // pred_region
    _
  $region17: #{tpu_custom_call.1} parent=0 // pred_fallthru
    _
  // Predicated region
  $region18: #{tpu_custom_call.1} parent=0 // pred_check
    _
  $region19: #{tpu_custom_call.1} parent=0 // pred_check_branch
    %36 = sbr.rel (0) target = $region21
  $region20: #{tpu_custom_call.1} parent=0 // pred_region
    _
  $region21: #{tpu_custom_call.1} parent=0 // pred_fallthru
    _

</llo_original>
